<compile_context>
chip_gen: v6e
topology: v6e:2x2x1
jax: 0.10.0
libtpu: 0.0.40
codegen_flags: <defaults>
</compile_context>

<pallas_src>
import functools

import jax
import jax.numpy as jnp
from jax import lax
from jax.experimental import pallas as pl
from jax.experimental.pallas import tpu as pltpu

_INV_SQRT2 = 0.7071067811865476


def _gelu_exact_f32(h):
    # Exact (erf-based) GELU, matching torch.nn.GELU() default, computed in f32.
    # TODO(synk): tanh-approx GELU would route work to the otherwise-idle EUP slot once
    # compute-bound, at ~1e-3 deviation from the exact erf formulation.
    return 0.5 * h * (1.0 + lax.erf(h * jnp.float32(_INV_SQRT2)))


# ----------------------------------------------------------------------------- kernels


def _ffn_kernel_resident(x_ref, w1_ref, b1_ref, w2_ref, b2_ref, o_ref):
    """Full hidden dim resident in VMEM; grid = (row_tiles,). Weights are DMA'd once."""
    h = jnp.dot(x_ref[...], w1_ref[...], preferred_element_type=jnp.float32)
    h = _gelu_exact_f32(h + b1_ref[...].astype(jnp.float32))
    out = jnp.dot(h.astype(w2_ref.dtype), w2_ref[...], preferred_element_type=jnp.float32)
    o_ref[...] = (out + b2_ref[...].astype(jnp.float32)).astype(o_ref.dtype)


def _ffn_kernel_out_acc(x_ref, w1_ref, b1_ref, w2_ref, b2_ref, o_ref):
    """Hidden-tiled; f32 output block (index constant over k) doubles as the accumulator."""
    k = pl.program_id(1)
    h = jnp.dot(x_ref[...], w1_ref[...], preferred_element_type=jnp.float32)
    h = _gelu_exact_f32(h + b1_ref[...].astype(jnp.float32))
    part = jnp.dot(h.astype(w2_ref.dtype), w2_ref[...], preferred_element_type=jnp.float32)

    @pl.when(k == 0)
    def _init():
        o_ref[...] = part

    @pl.when(k > 0)
    def _accum():
        o_ref[...] += part

    @pl.when(k == pl.num_programs(1) - 1)
    def _finalize():
        o_ref[...] += b2_ref[...].astype(jnp.float32)


def _ffn_kernel_scratch_acc(x_ref, w1_ref, b1_ref, w2_ref, b2_ref, o_ref, acc_ref):
    """Hidden-tiled; non-f32 output -> accumulate in an f32 VMEM scratch."""
    k = pl.program_id(1)

    @pl.when(k == 0)
    def _init():
        acc_ref[...] = jnp.zeros_like(acc_ref)

    h = jnp.dot(x_ref[...], w1_ref[...], preferred_element_type=jnp.float32)
    h = _gelu_exact_f32(h + b1_ref[...].astype(jnp.float32))
    acc_ref[...] += jnp.dot(h.astype(w2_ref.dtype), w2_ref[...],
                            preferred_element_type=jnp.float32)

    @pl.when(k == pl.num_programs(1) - 1)
    def _finalize():
        o_ref[...] = (acc_ref[...] + b2_ref[...].astype(jnp.float32)).astype(o_ref.dtype)


# ----------------------------------------------------------------------------- tiling policy


def _round_up(a, b):
    return -(-a // b) * b


def _vmem_capacity_bytes():
    """Physical VMEM capacity (v5e/v6e: 128 MiB, v7x: 64 MiB); conservative fallback."""
    try:
        cap = int(pltpu.get_tpu_info().vmem_capacity_bytes)
        if cap > 0:
            return cap
    except Exception:
        pass
    return 64 * 1024 * 1024


def _working_set_bytes(tm, th, dim, xsz, wsz, osz, needs_scratch):
    """VMEM working set; Pallas double-buffers every BlockSpec'd operand by default."""
    # TODO(synk): pipeline_mode=pl.Buffered(1) on constant-index weight/bias blocks would halve
    # their footprint; left at the default for maximum lowering compatibility.
    return (2 * tm * dim * xsz              # x row tile
            + 2 * tm * dim * osz            # output row tile
            + 2 * dim * th * wsz            # W1 hidden slice
            + 2 * th * dim * wsz            # W2 hidden slice
            + 2 * 8 * max(th, 128) * wsz    # b1 (sublane-padded)
            + 2 * 8 * max(dim, 128) * wsz   # b2 (sublane-padded)
            + tm * th * 4                   # f32 GELU intermediate
            + (tm * dim * 4 if needs_scratch else 0))  # f32 accumulator (non-f32 outputs)


def _hidden_tile_candidates(hidden, cap=1024):
    """128-multiple divisors of `hidden`, descending, capped at `cap`."""
    cands = []
    t = (min(cap, hidden) // 128) * 128
    while t >= 128:
        if hidden % t == 0:
            cands.append(t)
        t -= 128
    return cands


def _snap_hidden_tile(hidden, th):
    """Largest 128-multiple divisor of `hidden` that is <= th, else the full hidden."""
    if th >= hidden:
        return hidden
    t = (min(th, hidden) // 128) * 128
    while t >= 128:
        if hidden % t == 0:
            return t
        t -= 128
    # TODO(synk): hiddens with no 128-multiple divisor fall back to fully-resident weights
    # (a VMEM-pressure risk for very large odd hiddens); tail-block masking is not implemented.
    return hidden


def _choose_tiles(n, dim, hidden, xsz, wsz, osz, out_is_f32, budget, big_vmem, tm, th):
    n_tile = _round_up(max(n, 1), 16)

    # Explicit override path (tests / manual tuning): honor the request, snapped to legal values.
    if tm is not None or th is not None:
        tm_eff = _round_up(min(tm if tm is not None else 256, n_tile), 16)
        th_eff = _snap_hidden_tile(hidden, th if th is not None else 512)
        return tm_eff, th_eff

    # Row-tile target: clear the per-generation HBM roofline when weights must be re-streamed,
    # and amortize the ~0.35us/grid-step overhead.  v5e/v6e (128 MiB VMEM) -> 1024, v7x -> 512.
    tm_target = 1024 if big_vmem else 512
    if n >= 512:  # keep >= 2 row tiles so both v7x TensorCores get work on large inputs
        tm_target = min(tm_target, _round_up(-(-n // 2), 16))
    tm_cands = [c for c in (1024, 768, 512, 384, 256, 192, 128, 96, 64, 48, 32, 16)
                if c <= min(tm_target, n_tile)]
    if not tm_cands:
        tm_cands = [n_tile]

    # 1) Fully-resident-weights fast path: hidden untiled -> weights DMA'd once per call.
    for cand in tm_cands:
        if _working_set_bytes(cand, hidden, dim, xsz, wsz, osz, False) <= budget:
            if cand >= min(256, n_tile):  # don't starve the MXU just to keep weights resident
                return cand, hidden
            break

    # 2) Hidden-tiled path: shrink th before tm (tm protects the HBM roofline).
    th_cands = _hidden_tile_candidates(hidden) or [hidden]
    needs_scratch = not out_is_f32
    for cand in tm_cands:
        for thc in th_cands:
            if _working_set_bytes(cand, thc, dim, xsz, wsz, osz, needs_scratch) <= budget:
                return cand, thc
    return tm_cands[-1], th_cands[-1]


# ----------------------------------------------------------------------------- wrapper


@functools.partial(jax.jit, static_argnames=("tm", "th"))
def feed_forward(x, w1, b1, w2, b2, *, tm=None, th=None):
    """x: (batch, seq, dim) -> (batch, seq, dim). Dropout is identity (p=0.0 / eval).

    tm: row (token) tile; th: hidden tile. None -> auto-tuned from VMEM capacity and shapes.
    """
    # TODO(synk): dropout is a no-op here (p=0.0 / inference); stochastic dropout would use
    # pltpu.prng_seed / pltpu.prng_random_bits on the activations.
    batch, seq, dim = x.shape
    hidden = w1.shape[1]
    n = batch * seq
    out_dtype = x.dtype

    # Accept PyTorch-style 1-D biases; the kernel wants lane-dense (1, features) rows.
    if b1.ndim == 1:
        b1 = b1.reshape(1, hidden)
    if b2.ndim == 1:
        b2 = b2.reshape(1, dim)

    # Match the activation dtype to the weight dtype so the MXU takes its fast path
    # (bf16 weights -> bf16 operands at full rate); accumulation stays f32.
    x2d = x.reshape(n, dim)
    if x2d.dtype != w1.dtype:
        x2d = x2d.astype(w1.dtype)

    xsz = jnp.dtype(x2d.dtype).itemsize
    wsz = jnp.dtype(w1.dtype).itemsize
    osz = jnp.dtype(out_dtype).itemsize
    out_is_f32 = jnp.dtype(out_dtype) == jnp.dtype(jnp.float32)

    capacity = _vmem_capacity_bytes()
    budget = int(0.75 * capacity)              # ~25% headroom for compiler-internal scratch
    big_vmem = capacity >= 100 * 1024 * 1024   # v5e/v6e (128 MiB) vs v7x (64 MiB)

    tm_eff, th_eff = _choose_tiles(n, dim, hidden, xsz, wsz, osz, out_is_f32,
                                   budget, big_vmem, tm, th)
    resident = th_eff >= hidden
    row_tiles = -(-n // tm_eff)
    needs_scratch = (not resident) and (not out_is_f32)

    est = _working_set_bytes(tm_eff, th_eff, dim, xsz, wsz, osz, needs_scratch)
    vmem_limit = int(min(capacity, max(32 * 1024 * 1024, int(1.5 * est))))

    # Real HBM traffic: weights are re-streamed once per row tile when the hidden dim is tiled.
    param_bytes = (w1.size * wsz + w2.size * wsz
                   + b1.size * jnp.dtype(b1.dtype).itemsize
                   + b2.size * jnp.dtype(b2.dtype).itemsize)
    w_stream = 1 if resident else row_tiles
    cost = pl.CostEstimate(
        flops=4 * n * dim * hidden,            # two matmuls, 2*M*N*K each
        transcendentals=n * hidden,            # erf per hidden activation
        bytes_accessed=x2d.size * xsz + n * dim * osz + w_stream * param_bytes,
    )

    if resident:
        grid = (row_tiles,)
        in_specs = [
            pl.BlockSpec((tm_eff, dim), lambda i: (i, 0)),      # x row tile
            pl.BlockSpec((dim, hidden), lambda i: (0, 0)),      # W1 (constant index -> 1 DMA)
            pl.BlockSpec((1, hidden), lambda i: (0, 0)),        # b1
            pl.BlockSpec((hidden, dim), lambda i: (0, 0)),      # W2 (constant index -> 1 DMA)
            pl.BlockSpec((1, dim), lambda i: (0, 0)),           # b2
        ]
        out_specs = pl.BlockSpec((tm_eff, dim), lambda i: (i, 0))
        kernel = _ffn_kernel_resident
        scratch = []
        dim_sem = ("parallel",)
    else:
        grid = (row_tiles, hidden // th_eff)
        in_specs = [
            pl.BlockSpec((tm_eff, dim), lambda i, k: (i, 0)),   # x row tile (resident over k)
            pl.BlockSpec((dim, th_eff), lambda i, k: (0, k)),   # W1 hidden slice
            pl.BlockSpec((1, th_eff), lambda i, k: (0, k)),     # b1 hidden slice
            pl.BlockSpec((th_eff, dim), lambda i, k: (k, 0)),   # W2 hidden slice
            pl.BlockSpec((1, dim), lambda i, k: (0, 0)),        # b2 (full)
        ]
        out_specs = pl.BlockSpec((tm_eff, dim), lambda i, k: (i, 0))
        if out_is_f32:
            kernel = _ffn_kernel_out_acc                        # accumulate in the output block
            scratch = []
        else:
            kernel = _ffn_kernel_scratch_acc                    # f32 scratch accumulator
            scratch = [pltpu.VMEM((tm_eff, dim), jnp.float32)]
        dim_sem = ("parallel", "arbitrary")

    out2d = pl.pallas_call(
        kernel,
        out_shape=jax.ShapeDtypeStruct((n, dim), out_dtype),
        grid_spec=pltpu.PrefetchScalarGridSpec(
            num_scalar_prefetch=0,
            grid=grid,
            in_specs=in_specs,
            out_specs=out_specs,
            scratch_shapes=scratch,
        ),
        compiler_params=pltpu.CompilerParams(
            dimension_semantics=dim_sem,
            vmem_limit_bytes=vmem_limit,
        ),
        cost_estimate=cost,
    )(x2d, w1, b1, w2, b2)

    return out2d.reshape(batch, seq, dim)


# ----------------------------------------------------------------------------- test harness


def _init_params(key, dim, hidden_dim, dtype=jnp.float32):
    # Deterministic init mimicking torch.nn.Linear default: U(-1/sqrt(fan_in), 1/sqrt(fan_in)).
    k1, k2, k3, k4 = jax.random.split(key, 4)
    lim1 = 1.0 / float(jnp.sqrt(dim))
    lim2 = 1.0 / float(jnp.sqrt(hidden_dim))
    w1 = jax.random.uniform(k1, (dim, hidden_dim), dtype, -lim1, lim1)
    b1 = jax.random.uniform(k2, (1, hidden_dim), dtype, -lim1, lim1)
    w2 = jax.random.uniform(k3, (hidden_dim, dim), dtype, -lim2, lim2)
    b2 = jax.random.uniform(k4, (1, dim), dtype, -lim2, lim2)
    return w1, b1, w2, b2


def _reference(x, w1, b1, w2, b2):
    # Pure-JAX reference (exact erf GELU), f32 math, mimicking the kernel's second-matmul cast.
    f32 = jnp.float32
    x2 = x.reshape(-1, x.shape[-1]).astype(f32)
    h = jnp.dot(x2, w1.astype(f32), precision=lax.Precision.HIGHEST) + b1.reshape(1, -1).astype(f32)
    h = 0.5 * h * (1.0 + lax.erf(h * f32(_INV_SQRT2)))
    h = h.astype(w2.dtype).astype(f32)
    out = jnp.dot(h, w2.astype(f32), precision=lax.Precision.HIGHEST) + b2.reshape(1, -1).astype(f32)
    return out.reshape(x.shape).astype(x.dtype)


if __name__ == "__main__":
    key = jax.random.PRNGKey(0)

    # Test 1: small f32 shapes, auto-tiling -> fully-resident-weights path (single grid axis).
    batch, seq, dim, hidden_dim = 2, 8, 32, 64
    kx, kp, key = jax.random.split(key, 3)
    x = jax.random.normal(kx, (batch, seq, dim), jnp.float32)
    w1, b1, w2, b2 = _init_params(kp, dim, hidden_dim)
    out = jax.block_until_ready(feed_forward(x, w1, b1, w2, b2))
    ref = _reference(x, w1, b1, w2, b2)
    assert jnp.allclose(out, ref, atol=1e-4, rtol=1e-4), "mismatch vs reference (resident path)"

    # Test 2: forced hidden tiling, f32 output -> accumulate-into-output kernel (2 k steps).
    batch, seq, dim, hidden_dim = 2, 64, 128, 256
    kx, kp, key = jax.random.split(key, 3)
    x = jax.random.normal(kx, (batch, seq, dim), jnp.float32)
    w1, b1, w2, b2 = _init_params(kp, dim, hidden_dim)
    out = jax.block_until_ready(feed_forward(x, w1, b1, w2, b2, tm=128, th=128))
    ref = _reference(x, w1, b1, w2, b2)
    assert jnp.allclose(out, ref, atol=1e-3, rtol=1e-3), "mismatch vs reference (out-acc path)"

    # Test 3: bf16 weights & activations, forced hidden tiling -> f32-scratch accumulator kernel
    # and the bf16 MXU operand path.
    batch, seq, dim, hidden_dim = 2, 64, 128, 256
    kx, kp, key = jax.random.split(key, 3)
    x = jax.random.normal(kx, (batch, seq, dim), jnp.bfloat16)
    w1, b1, w2, b2 = _init_params(kp, dim, hidden_dim, dtype=jnp.bfloat16)
    out = jax.block_until_ready(feed_forward(x, w1, b1, w2, b2, tm=64, th=128))
    ref = _reference(x, w1, b1, w2, b2)
    assert jnp.allclose(out.astype(jnp.float32), ref.astype(jnp.float32),
                        atol=2e-2, rtol=2e-2), "mismatch vs reference (bf16 scratch-acc path)"

    print("KERNEL_OK")
</pallas_src>

<mosaic_0001>
module attributes {stable_mosaic.version = 11 : i64} {
  func.func @_ffn_kernel_resident(%arg0: i32, %arg1: memref<16x32xf32, #tpu.memory_space<vmem>>, %arg2: memref<32x64xf32, #tpu.memory_space<vmem>>, %arg3: memref<1x64xf32, #tpu.memory_space<vmem>>, %arg4: memref<64x32xf32, #tpu.memory_space<vmem>>, %arg5: memref<1x32xf32, #tpu.memory_space<vmem>>, %arg6: memref<16x32xf32, #tpu.memory_space<vmem>>) attributes {dimension_semantics = [#tpu.dimension_semantics<parallel>], iteration_bounds = array<i64: 1>, scalar_prefetch = 0 : i64, scratch_operands = 0 : i64, tpu.core_type = #tpu.core_type<tc>, window_params = [{transform_indices = @transform_0, window_bounds = array<i64: 16, 32>}, {pipeline_mode = #tpu.pipeline_mode<synchronous>, transform_indices = @transform_1, window_bounds = array<i64: 32, 64>}, {pipeline_mode = #tpu.pipeline_mode<synchronous>, transform_indices = @transform_2, window_bounds = array<i64: 1, 64>}, {pipeline_mode = #tpu.pipeline_mode<synchronous>, transform_indices = @transform_3, window_bounds = array<i64: 64, 32>}, {pipeline_mode = #tpu.pipeline_mode<synchronous>, transform_indices = @transform_4, window_bounds = array<i64: 1, 32>}, {transform_indices = @transform_5, window_bounds = array<i64: 16, 32>}]} {
    %c0 = arith.constant 0 : index
    %c0_0 = arith.constant 0 : index
    %0 = vector.load %arg1[%c0, %c0_0] : memref<16x32xf32, #tpu.memory_space<vmem>>, vector<16x32xf32>
    %c0_1 = arith.constant 0 : index
    %c0_2 = arith.constant 0 : index
    %1 = vector.load %arg2[%c0_1, %c0_2] : memref<32x64xf32, #tpu.memory_space<vmem>>, vector<32x64xf32>
    %cst = arith.constant dense<0.000000e+00> : vector<16x64xf32>
    %2 = tpu.matmul %0, %1, %cst {dimension_numbers = #tpu.dot_dimension_numbers<[1], [0], [0], [1], [0, 0, 1, 1], [], []>} : vector<16x32xf32>, vector<32x64xf32>, vector<16x64xf32> -> vector<16x64xf32>
    %c0_3 = arith.constant 0 : index
    %c0_4 = arith.constant 0 : index
    %3 = vector.load %arg3[%c0_3, %c0_4] : memref<1x64xf32, #tpu.memory_space<vmem>>, vector<1x64xf32>
    %4 = vector.broadcast %3 : vector<1x64xf32> to vector<16x64xf32>
    %5 = arith.addf %2, %4 : vector<16x64xf32>
    %cst_5 = arith.constant 5.000000e-01 : f32
    %6 = vector.broadcast %cst_5 : f32 to vector<16x64xf32>
    %7 = arith.mulf %6, %5 : vector<16x64xf32>
    %cst_6 = arith.constant 0.707106769 : f32
    %8 = vector.broadcast %cst_6 : f32 to vector<16x64xf32>
    %9 = arith.mulf %5, %8 : vector<16x64xf32>
    %10 = math.erf %9 : vector<16x64xf32>
    %cst_7 = arith.constant 1.000000e+00 : f32
    %11 = vector.broadcast %cst_7 : f32 to vector<16x64xf32>
    %12 = arith.addf %11, %10 : vector<16x64xf32>
    %13 = arith.mulf %7, %12 : vector<16x64xf32>
    %c0_8 = arith.constant 0 : index
    %c0_9 = arith.constant 0 : index
    %14 = vector.load %arg4[%c0_8, %c0_9] : memref<64x32xf32, #tpu.memory_space<vmem>>, vector<64x32xf32>
    %cst_10 = arith.constant dense<0.000000e+00> : vector<16x32xf32>
    %15 = tpu.matmul %13, %14, %cst_10 {dimension_numbers = #tpu.dot_dimension_numbers<[1], [0], [0], [1], [0, 0, 1, 1], [], []>} : vector<16x64xf32>, vector<64x32xf32>, vector<16x32xf32> -> vector<16x32xf32>
    %c0_11 = arith.constant 0 : index
    %c0_12 = arith.constant 0 : index
    %16 = vector.load %arg5[%c0_11, %c0_12] : memref<1x32xf32, #tpu.memory_space<vmem>>, vector<1x32xf32>
    %17 = vector.broadcast %16 : vector<1x32xf32> to vector<16x32xf32>
    %18 = arith.addf %15, %17 : vector<16x32xf32>
    %c0_13 = arith.constant 0 : index
    %c0_14 = arith.constant 0 : index
    %19 = vector.load %arg6[%c0_13, %c0_14] : memref<16x32xf32, #tpu.memory_space<vmem>>, vector<16x32xf32>
    tpu.vector_store %arg6[%c0_13, %c0_14], %18 {strides = array<i32>} : memref<16x32xf32, #tpu.memory_space<vmem>>, vector<16x32xf32>,
    return
  }
  func.func @transform_0(%arg0: i32) -> (i32, i32) {
    %c0_i32 = arith.constant 0 : i32
    %c0_i32_0 = arith.constant 0 : i32
    return %arg0, %c0_i32 : i32, i32
  }
  func.func @transform_1(%arg0: i32) -> (i32, i32) {
    %c0_i32 = arith.constant 0 : i32
    %c0_i32_0 = arith.constant 0 : i32
    %c0_i32_1 = arith.constant 0 : i32
    return %c0_i32, %c0_i32_0 : i32, i32
  }
  func.func @transform_2(%arg0: i32) -> (i32, i32) {
    %c0_i32 = arith.constant 0 : i32
    %c0_i32_0 = arith.constant 0 : i32
    %c0_i32_1 = arith.constant 0 : i32
    return %c0_i32, %c0_i32_0 : i32, i32
  }
  func.func @transform_3(%arg0: i32) -> (i32, i32) {
    %c0_i32 = arith.constant 0 : i32
    %c0_i32_0 = arith.constant 0 : i32
    %c0_i32_1 = arith.constant 0 : i32
    return %c0_i32, %c0_i32_0 : i32, i32
  }
  func.func @transform_4(%arg0: i32) -> (i32, i32) {
    %c0_i32 = arith.constant 0 : i32
    %c0_i32_0 = arith.constant 0 : i32
    %c0_i32_1 = arith.constant 0 : i32
    return %c0_i32, %c0_i32_0 : i32, i32
  }
  func.func @transform_5(%arg0: i32) -> (i32, i32) {
    %c0_i32 = arith.constant 0 : i32
    %c0_i32_0 = arith.constant 0 : i32
    return %arg0, %c0_i32 : i32, i32
  }
}

</mosaic_0001>

<llo_original>
// kernel: feed_forward.1
$region0: #{feed_forward.1}
  #allocation0 [shape = 'u32[]', space=smem, size = 0x4, offset = 0x4, fixed_abs, tag = 'smem constant byte address 0x4 - core index']
  #allocation1 [shape = 'u32[144,128]{1,0:T(1,128)}', space=vmem, size = 0x12000, scoped, tag = 'internal scratch']
  %s0 = inlined_call_operand.vmem [shape: f32[16,32], index: 0, kind: input, shape index: {}]
  %s1 = inlined_call_operand.vmem [shape: f32[32,64], index: 1, kind: input, shape index: {}]
  %s2 = inlined_call_operand.vmem [shape: f32[1,64], index: 2, kind: input, shape index: {}]
  %s3 = inlined_call_operand.vmem [shape: f32[64,32], index: 3, kind: input, shape index: {}]
  %s4 = inlined_call_operand.vmem [shape: f32[1,32], index: 4, kind: input, shape index: {}]
  %s5 = inlined_call_operand.hbm [shape: f32[16,32], index: 5, kind: output, shape index: {}]
  %s6 = sld [smem:[#allocation0]]
  $region30: #{feed_forward.1} parent=0
    _
  %s8 = ssub.s32 1, %s6
  %s9 = scalar_select 0, %s8, %s6
  $region1: #{feed_forward.1} parent=0
    #allocation2 [shape = 'u8[8192]{0}', space=vmem, size = 0x2000, scoped, tag = 'output window, operand 0, single buffered']
    #allocation3 [shape = 's32[1]{0}', space=sflag, size = 0x4, scoped, tag = 'scoped memory for feed_forward.1']
    %10 = vsyncpa [#allocation3], 0
    // Predicated region
    $region2: #{feed_forward.1} parent=1 // pred_check
      _
    $region3: #{feed_forward.1} parent=1 // pred_check_branch
      %12 = sbr.rel (0) target = $region5
    $region4: #{feed_forward.1} parent=1 // pred_region
      _
    $region5: #{feed_forward.1} parent=1 // pred_fallthru
      _
    // Predicated region
    $region6: #{feed_forward.1} parent=1 // pred_check
      _
    $region7: #{feed_forward.1} parent=1 // pred_check_branch
      %14 = sbr.rel (0) target = $region9
    $region8: #{feed_forward.1} parent=1 // pred_region
      _
    $region9: #{feed_forward.1} parent=1 // pred_fallthru
      _
    // Predicated region
    $region10: #{feed_forward.1} parent=1 // pred_check
      _
    $region11: #{feed_forward.1} parent=1 // pred_check_branch
      %16 = sbr.rel (0) target = $region13
    $region12: #{feed_forward.1} parent=1 // pred_region
      _
    $region13: #{feed_forward.1} parent=1 // pred_fallthru
      _
    // Predicated region
    $region14: #{feed_forward.1} parent=1 // pred_check
      _
    $region15: #{feed_forward.1} parent=1 // pred_check_branch
      %18 = sbr.rel (0) target = $region17
    $region16: #{feed_forward.1} parent=1 // pred_region
      _
    $region17: #{feed_forward.1} parent=1 // pred_fallthru
      _
    // Predicated region
    $region18: #{feed_forward.1} parent=1 // pred_check
      _
    $region19: #{feed_forward.1} parent=1 // pred_check_branch
      %20 = sbr.rel (0) target = $region21
    $region20: #{feed_forward.1} parent=1 // pred_region
      _
    $region21: #{feed_forward.1} parent=1 // pred_fallthru
      _
    %v21 = vld [vmem:[%s0] sm:$0xff]
    %v22 = vld [vmem:[%s0 + $0x8] sm:$0xff]
    %v23 = vld [vmem:[%s1] sm:$0xff]
    %v24 = vld [vmem:[%s1 + $0x8] sm:$0xff]
    %v25 = vld [vmem:[%s1 + $0x10] sm:$0xff]
    %v26 = vld [vmem:[%s1 + $0x18] sm:$0xff]
    %v27 = vld [vmem:[%s2] sm:$0x1]
    %v29 = vlaneseq
    %v30 = vshrl.u32 %v29, 7
    %v31 = vsub.s32 0, %v30
    %v32 = vrot.slane %v27, %v31
    %vm34 = vcmask 261120
    %v36 = vsel %vm34, %v21, 0
    %v39 = vsel %vm34, %v22, 0
    %41 = vmatprep.subr.mxu0 0.0
    %42 = vmatpush1.msra.mxu0 0.0
    %43 = vmatprep.subr.mxu0 0.0
    %44 = vmatpush1.msra.mxu0 0.0
    %45 = vmatprep.subr.mxu0 0.0
    %46 = vmatpush1.msra.mxu0 0.0
    %47 = vmatprep.subr.mxu0 0.0
    %48 = vmatpush1.msra.mxu0 0.0
    %49 = vmatprep.subr.mxu0 0.0
    %50 = vmatpush1.msra.mxu0 0.0
    %51 = vmatprep.subr.mxu0 0.0
    %52 = vmatpush1.msra.mxu0 0.0
    %53 = vmatprep.subr.mxu0 0.0
    %54 = vmatpush1.msra.mxu0 0.0
    %55 = vmatprep.subr.mxu0 0.0
    %56 = vmatpush1.msra.mxu0 0.0
    %57 = vmatprep.subr.mxu0 0.0
    %58 = vmatpush1.msra.mxu0 0.0
    %59 = vmatprep.subr.mxu0 0.0
    %60 = vmatpush1.msra.mxu0 0.0
    %61 = vmatprep.subr.mxu0 0.0
    %62 = vmatpush1.msra.mxu0 0.0
    %63 = vmatprep.subr.mxu0 0.0
    %64 = vmatpush1.msra.mxu0 0.0
    %65 = vmatprep.subr.mxu0 0.0
    %66 = vmatpush1.msra.mxu0 %v26
    %67 = vmatprep.subr.mxu0 0.0
    %68 = vmatpush1.msra.mxu0 %v25
    %69 = vmatprep.subr.mxu0 0.0
    %70 = vmatpush1.msra.mxu0 %v24
    %71 = vmatprep.subr.mxu0 0.0
    %72 = vmatpush1.msra.mxu0 %v23
    %73 = vmatprep.subr.mxu0 0.0
    %74 = vmatpush2.msra.mxu0 0.0
    %75 = vmatprep.subr.mxu0 0.0
    %76 = vmatpush2.msra.mxu0 0.0
    %77 = vmatprep.subr.mxu0 0.0
    %78 = vmatpush2.msra.mxu0 0.0
    %79 = vmatprep.subr.mxu0 0.0
    %80 = vmatpush2.msra.mxu0 0.0
    %81 = vmatprep.subr.mxu0 0.0
    %82 = vmatpush2.msra.mxu0 0.0
    %83 = vmatprep.subr.mxu0 0.0
    %84 = vmatpush2.msra.mxu0 0.0
    %85 = vmatprep.subr.mxu0 0.0
    %86 = vmatpush2.msra.mxu0 0.0
    %87 = vmatprep.subr.mxu0 0.0
    %88 = vmatpush2.msra.mxu0 0.0
    %89 = vmatprep.subr.mxu0 0.0
    %90 = vmatpush2.msra.mxu0 0.0
    %91 = vmatprep.subr.mxu0 0.0
    %92 = vmatpush2.msra.mxu0 0.0
    %93 = vmatprep.subr.mxu0 0.0
    %94 = vmatpush2.msra.mxu0 0.0
    %95 = vmatprep.subr.mxu0 0.0
    %96 = vmatpush2.msra.mxu0 0.0
    %97 = vmatprep.subr.mxu0 0.0
    %98 = vmatpush2.msra.mxu0 0.0
    %99 = vmatprep.subr.mxu0 0.0
    %100 = vmatpush2.msra.mxu0 0.0
    %101 = vmatprep.subr.mxu0 0.0
    %102 = vmatpush2.msra.mxu0 0.0
    %103 = vmatprep.subr.mxu0 0.0
    %104 = vmatpush2.msra.mxu0 0.0
    %105 = vmatprep.mubr.f32.mxu0 0.0
    %106 = vmatmul.mubr.f32.gmra.mxu0 %v36
    %v107 = vpop.f32.mrf.mxu0
    %v108 = vadd.f32 %v32, %v107
    %v109 = vpop.f32.mrf.mxu0
    %110 = vmatprep.mubr.f32.mxu0 0.0
    %111 = vmatmul.mubr.f32.gmra.mxu0 %v39
    %v112 = vpop.f32.mrf.mxu0
    %v113 = vadd.f32 %v32, %v112
    %v114 = vpop.f32.mrf.mxu0
    %115 = vdwg.mxu0
    %v116 = vmul.f32 %v108, 0.5
    %v117 = vmul.f32 %v113, 0.5
    %v118 = vmul.f32 %v108, 0.70710677
    %v119 = vmul.f32 %v113, 0.70710677
    %v120 = verf.f32.pop %v118
    %v121 = verf.f32.pop %v119
    %v122 = vadd.f32 %v120, 1.0
    %v123 = vadd.f32 %v121, 1.0
    %v124 = vmul.f32 %v116, %v122
    %v125 = vmul.f32 %v117, %v123
    %v126 = vld [vmem:[%s3] sm:$0xff]
    %v127 = vld [vmem:[%s3 + $0x8] sm:$0xff]
    %v128 = vld [vmem:[%s3 + $0x10] sm:$0xff]
    %v129 = vld [vmem:[%s3 + $0x18] sm:$0xff]
    %v130 = vld [vmem:[%s3 + $0x20] sm:$0xff]
    %v131 = vld [vmem:[%s3 + $0x28] sm:$0xff]
    %v132 = vld [vmem:[%s3 + $0x30] sm:$0xff]
    %v133 = vld [vmem:[%s3 + $0x38] sm:$0xff]
    %v134 = vld [vmem:[%s4] sm:$0x1]
    %v136 = vlaneseq
    %v137 = vshrl.u32 %v136, 7
    %v138 = vsub.s32 0, %v137
    %v139 = vrot.slane %v134, %v138
    %vm141 = vcmask 523264
    %v143 = vsel %vm141, %v124, 0
    %v146 = vsel %vm141, %v125, 0
    %148 = vmatprep.subr.mxu0 0.0
    %149 = vmatpush1.msra.mxu0 0.0
    %150 = vmatprep.subr.mxu0 0.0
    %151 = vmatpush1.msra.mxu0 0.0
    %152 = vmatprep.subr.mxu0 0.0
    %153 = vmatpush1.msra.mxu0 0.0
    %154 = vmatprep.subr.mxu0 0.0
    %155 = vmatpush1.msra.mxu0 0.0
    %156 = vmatprep.subr.mxu0 0.0
    %157 = vmatpush1.msra.mxu0 0.0
    %158 = vmatprep.subr.mxu0 0.0
    %159 = vmatpush1.msra.mxu0 0.0
    %160 = vmatprep.subr.mxu0 0.0
    %161 = vmatpush1.msra.mxu0 0.0
    %162 = vmatprep.subr.mxu0 0.0
    %163 = vmatpush1.msra.mxu0 0.0
    %164 = vmatprep.subr.mxu0 0.0
    %165 = vmatpush1.msra.mxu0 %v133
    %166 = vmatprep.subr.mxu0 0.0
    %167 = vmatpush1.msra.mxu0 %v132
    %168 = vmatprep.subr.mxu0 0.0
    %169 = vmatpush1.msra.mxu0 %v131
    %170 = vmatprep.subr.mxu0 0.0
    %171 = vmatpush1.msra.mxu0 %v130
    %172 = vmatprep.subr.mxu0 0.0
    %173 = vmatpush1.msra.mxu0 %v129
    %174 = vmatprep.subr.mxu0 0.0
    %175 = vmatpush1.msra.mxu0 %v128
    %176 = vmatprep.subr.mxu0 0.0
    %177 = vmatpush1.msra.mxu0 %v127
    %178 = vmatprep.subr.mxu0 0.0
    %179 = vmatpush1.msra.mxu0 %v126
    %180 = vmatprep.subr.mxu0 0.0
    %181 = vmatpush2.msra.mxu0 0.0
    %182 = vmatprep.subr.mxu0 0.0
    %183 = vmatpush2.msra.mxu0 0.0
    %184 = vmatprep.subr.mxu0 0.0
    %185 = vmatpush2.msra.mxu0 0.0
    %186 = vmatprep.subr.mxu0 0.0
    %187 = vmatpush2.msra.mxu0 0.0
    %188 = vmatprep.subr.mxu0 0.0
    %189 = vmatpush2.msra.mxu0 0.0
    %190 = vmatprep.subr.mxu0 0.0
    %191 = vmatpush2.msra.mxu0 0.0
    %192 = vmatprep.subr.mxu0 0.0
    %193 = vmatpush2.msra.mxu0 0.0
    %194 = vmatprep.subr.mxu0 0.0
    %195 = vmatpush2.msra.mxu0 0.0
    %196 = vmatprep.subr.mxu0 0.0
    %197 = vmatpush2.msra.mxu0 0.0
    %198 = vmatprep.subr.mxu0 0.0
    %199 = vmatpush2.msra.mxu0 0.0
    %200 = vmatprep.subr.mxu0 0.0
    %201 = vmatpush2.msra.mxu0 0.0
    %202 = vmatprep.subr.mxu0 0.0
    %203 = vmatpush2.msra.mxu0 0.0
    %204 = vmatprep.subr.mxu0 0.0
    %205 = vmatpush2.msra.mxu0 0.0
    %206 = vmatprep.subr.mxu0 0.0
    %207 = vmatpush2.msra.mxu0 0.0
    %208 = vmatprep.subr.mxu0 0.0
    %209 = vmatpush2.msra.mxu0 0.0
    %210 = vmatprep.subr.mxu0 0.0
    %211 = vmatpush2.msra.mxu0 0.0
    %212 = vmatprep.mubr.f32.mxu0 0.0
    %213 = vmatmul.mubr.f32.gmra.mxu0 %v143
    %v214 = vpop.f32.mrf.mxu0
    %v215 = vadd.f32 %v139, %v214
    %v216 = vpop.f32.mrf.mxu0
    %217 = vmatprep.mubr.f32.mxu0 0.0
    %218 = vmatmul.mubr.f32.gmra.mxu0 %v146
    %v219 = vpop.f32.mrf.mxu0
    %v220 = vadd.f32 %v139, %v219
    %v221 = vpop.f32.mrf.mxu0
    %222 = vdwg.mxu0
    %223 = vst.msk [vmem:[#allocation2] sm:$0xff] %vm34, %v215
    %224 = vst.msk [vmem:[#allocation2 + $0x8] sm:$0xff] %vm34, %v220
    // Predicated region
    $region22: #{feed_forward.1} parent=1 // pred_check
      _
    $region23: #{feed_forward.1} parent=1 // pred_check_branch
      %226 = sbr.rel (0) target = $region25
    $region24: #{feed_forward.1} parent=1 // pred_region
      %s228 = ssub.s32 256, 256
      %229 = vsyncadd [#allocation3], %s228
      %s230 = sshll.u32 [#allocation2], 4
      %s231 = int_to_ptr.vmem [resolvable:$true] %s230
      %236 = dma.vmem_to_hbm [thread:$0]  %s231, 256, %s5, [#allocation3], 128, 128, 8
    $region25: #{feed_forward.1} parent=1 // pred_fallthru
      _
    // Predicated region
    $region26: #{feed_forward.1} parent=1 // pred_check
      _
    $region27: #{feed_forward.1} parent=1 // pred_check_branch
      %238 = sbr.rel (0) target = $region29
    $region28: #{feed_forward.1} parent=1 // pred_region
      %239 = dma.done [#allocation3], 256
    $region29: #{feed_forward.1} parent=1 // pred_fallthru
      _
    %240 = vsyncpa [#allocation3], 1

</llo_original>
